<compile_context>
chip_gen: v6e
topology: v6e:2x2x1
jax: 0.10.0
libtpu: 0.0.40
codegen_flags: <defaults>
</compile_context>

<pallas_src>
import jax
import jax.numpy as jnp
from jax.experimental import pallas as pl
from jax.experimental.pallas import tpu as pltpu

LN0_EPS = 1e-5   # nn.LayerNorm default
LN1_EPS = 0.01
D = 64
R = 24


def _fused_ln_kernel(x_ref, y_ref, wb_ref, xo_ref, yz_ref):
    # x_ref : (Nx, 64)      all x rows, flattened
    # y_ref : (B, 24, 64)   y with its batch axis kept (ln_1 is per-batch)
    # wb_ref: (2, 64)       row 0 = weight, row 1 = bias
    # xo_ref: (Nx, 64)
    # yz_ref: (B, 24, 128)  lanes [0:64] = y_out, lanes [64:128] = z_out
    w = wb_ref[0:1, :].astype(jnp.float32)   # (1, 64) free static views
    b = wb_ref[1:2, :].astype(jnp.float32)

    # ---- ln_0 on x: per-row LayerNorm over 64 lanes (two-pass stats) ----
    x = x_ref[...].astype(jnp.float32)
    mx = jnp.mean(x, axis=-1, keepdims=True)
    cx = x - mx
    vx = jnp.mean(cx * cx, axis=-1, keepdims=True)
    xo_ref[...] = (cx * jax.lax.rsqrt(vx + LN0_EPS) * w + b).astype(xo_ref.dtype)

    # ---- ln_0 on y ----
    y = y_ref[...].astype(jnp.float32)
    my = jnp.mean(y, axis=-1, keepdims=True)
    cy = y - my
    vy = jnp.mean(cy * cy, axis=-1, keepdims=True)
    y_aff = cy * jax.lax.rsqrt(vy + LN0_EPS) * w + b          # (B, 24, 64)

    # ---- ln_1: per-batch LayerNorm over the whole (24, 64) slab, no affine ----
    inv_n = jnp.float32(1.0 / (R * D))
    s = jnp.sum(y_aff, axis=-1, keepdims=True)                 # lane reduce (XLU)
    s = jnp.sum(s, axis=-2, keepdims=True)                     # sublane reduce
    m2 = s * inv_n                                             # (B, 1, 1)
    c2 = y_aff - m2
    s2 = jnp.sum(c2 * c2, axis=-1, keepdims=True)
    s2 = jnp.sum(s2, axis=-2, keepdims=True)
    v2 = s2 * inv_n
    z = c2 * jax.lax.rsqrt(v2 + LN1_EPS)

    # Single lane-dense (B, 24, 128) store: unmasked full-vreg vst.
    yz_ref[...] = jnp.concatenate([y_aff, z], axis=-1).astype(yz_ref.dtype)


def model_forward(x, y, weight, bias):
    """x: (Bx, S, 64); y: (By, 24, 64); weight/bias: (64,)."""
    Bx, S, Dx = x.shape
    By, Ry, Dy = y.shape
    assert Dx == D and Dy == D and Ry == R

    x2 = x.reshape(Bx * S, D)                 # lane-axis-last 2-D slab
    wb = jnp.stack([weight, bias], axis=0)    # (2, 64) single stream

    vmem = pltpu.MemorySpace.VMEM
    xo2, yz = pl.pallas_call(
        _fused_ln_kernel,
        out_shape=(
            jax.ShapeDtypeStruct((Bx * S, D), x.dtype),
            jax.ShapeDtypeStruct((By, R, 2 * D), y.dtype),
        ),
        in_specs=[
            pl.BlockSpec(memory_space=vmem),   # x, whole array
            pl.BlockSpec(memory_space=vmem),   # y, whole array
            pl.BlockSpec(memory_space=vmem),   # weight+bias
        ],
        out_specs=(
            pl.BlockSpec(memory_space=vmem),
            pl.BlockSpec(memory_space=vmem),
        ),
    )(x2, y, wb)

    x_out = xo2.reshape(Bx, S, D)
    y_out = yz[..., :D]
    z_out = yz[..., D:]
    return x_out, y_out, z_out


def _ref_forward(x, y, weight, bias):
    def ln(v, axes, eps, w=None, b=None):
        m = jnp.mean(v, axis=axes, keepdims=True)
        va = jnp.mean((v - m) ** 2, axis=axes, keepdims=True)
        o = (v - m) * jax.lax.rsqrt(va + eps)
        if w is not None:
            o = o * w + b
        return o
    xo = ln(x, (-1,), LN0_EPS, weight, bias)
    yo = ln(y, (-1,), LN0_EPS, weight, bias)
    zo = ln(yo, (-2, -1), LN1_EPS)
    return xo, yo, zo


if __name__ == "__main__":
    key = jax.random.PRNGKey(0)
    kx, ky, kw, kb = jax.random.split(key, 4)

    # small shapes consistent with the module's forward
    x = jax.random.uniform(kx, (2, 8, 64), dtype=jnp.float32)    # ln_0 over last dim
    y = jax.random.uniform(ky, (2, 24, 64), dtype=jnp.float32)   # ln_0, then ln_1 over (24, 64)

    # deterministic parameter init (mimics torch.rand(64))
    weight = jax.random.uniform(kw, (64,), dtype=jnp.float32)
    bias = jax.random.uniform(kb, (64,), dtype=jnp.float32)

    x_out, y_out, z_out = model_forward(x, y, weight, bias)
    jax.block_until_ready((x_out, y_out, z_out))

    # correctness check vs pure-JAX reference
    xr, yr, zr = _ref_forward(x, y, weight, bias)
    assert jnp.allclose(x_out, xr, atol=1e-5), "x mismatch"
    assert jnp.allclose(y_out, yr, atol=1e-5), "y mismatch"
    assert jnp.allclose(z_out, zr, atol=1e-5), "z mismatch"

    print("KERNEL_OK")
</pallas_src>

<mosaic_0001>
module attributes {stable_mosaic.version = 11 : i64} {
  func.func @_fused_ln_kernel(%arg0: memref<16x64xf32, #tpu.memory_space<vmem>>, %arg1: memref<2x24x64xf32, #tpu.memory_space<vmem>>, %arg2: memref<2x64xf32, #tpu.memory_space<vmem>>, %arg3: memref<16x64xf32, #tpu.memory_space<vmem>>, %arg4: memref<2x24x128xf32, #tpu.memory_space<vmem>>) attributes {dimension_semantics = [], scalar_prefetch = 0 : i64, scratch_operands = 0 : i64, tpu.core_type = #tpu.core_type<tc>} {
    %c0 = arith.constant 0 : index
    %c0_0 = arith.constant 0 : index
    %0 = vector.load %arg2[%c0, %c0_0] : memref<2x64xf32, #tpu.memory_space<vmem>>, vector<1x64xf32>
    %c1 = arith.constant 1 : index
    %c0_1 = arith.constant 0 : index
    %1 = vector.load %arg2[%c1, %c0_1] : memref<2x64xf32, #tpu.memory_space<vmem>>, vector<1x64xf32>
    %c0_2 = arith.constant 0 : index
    %c0_3 = arith.constant 0 : index
    %2 = vector.load %arg0[%c0_2, %c0_3] : memref<16x64xf32, #tpu.memory_space<vmem>>, vector<16x64xf32>
    %cst = arith.constant dense<0.000000e+00> : vector<16xf32>
    %3 = vector.multi_reduction <add>, %2, %cst [1] : vector<16x64xf32> to vector<16xf32>
    %4 = vector.shape_cast %3 : vector<16xf32> to vector<16x1xf32>
    %cst_4 = arith.constant 6.400000e+01 : f32
    %5 = vector.broadcast %cst_4 : f32 to vector<16x1xf32>
    %6 = arith.divf %4, %5 : vector<16x1xf32>
    %7 = vector.broadcast %6 : vector<16x1xf32> to vector<16x64xf32>
    %8 = arith.subf %2, %7 : vector<16x64xf32>
    %9 = arith.mulf %8, %8 : vector<16x64xf32>
    %cst_5 = arith.constant dense<0.000000e+00> : vector<16xf32>
    %10 = vector.multi_reduction <add>, %9, %cst_5 [1] : vector<16x64xf32> to vector<16xf32>
    %11 = vector.shape_cast %10 : vector<16xf32> to vector<16x1xf32>
    %cst_6 = arith.constant 6.400000e+01 : f32
    %12 = vector.broadcast %cst_6 : f32 to vector<16x1xf32>
    %13 = arith.divf %11, %12 : vector<16x1xf32>
    %cst_7 = arith.constant 9.99999974E-6 : f32
    %14 = vector.broadcast %cst_7 : f32 to vector<16x1xf32>
    %15 = arith.addf %13, %14 : vector<16x1xf32>
    %16 = math.rsqrt %15 : vector<16x1xf32>
    %17 = vector.broadcast %16 : vector<16x1xf32> to vector<16x64xf32>
    %18 = arith.mulf %8, %17 : vector<16x64xf32>
    %19 = vector.broadcast %0 : vector<1x64xf32> to vector<16x64xf32>
    %20 = arith.mulf %18, %19 : vector<16x64xf32>
    %21 = vector.broadcast %1 : vector<1x64xf32> to vector<16x64xf32>
    %22 = arith.addf %20, %21 : vector<16x64xf32>
    %c0_8 = arith.constant 0 : index
    %c0_9 = arith.constant 0 : index
    %23 = vector.load %arg3[%c0_8, %c0_9] : memref<16x64xf32, #tpu.memory_space<vmem>>, vector<16x64xf32>
    tpu.vector_store %arg3[%c0_8, %c0_9], %22 {strides = array<i32>} : memref<16x64xf32, #tpu.memory_space<vmem>>, vector<16x64xf32>,
    %c0_10 = arith.constant 0 : index
    %c0_11 = arith.constant 0 : index
    %c0_12 = arith.constant 0 : index
    %24 = vector.load %arg1[%c0_10, %c0_11, %c0_12] : memref<2x24x64xf32, #tpu.memory_space<vmem>>, vector<2x24x64xf32>
    %cst_13 = arith.constant dense<0.000000e+00> : vector<2x24xf32>
    %25 = vector.multi_reduction <add>, %24, %cst_13 [2] : vector<2x24x64xf32> to vector<2x24xf32>
    %26 = vector.shape_cast %25 : vector<2x24xf32> to vector<2x24x1xf32>
    %cst_14 = arith.constant 6.400000e+01 : f32
    %27 = vector.broadcast %cst_14 : f32 to vector<2x24x1xf32>
    %28 = arith.divf %26, %27 : vector<2x24x1xf32>
    %29 = vector.broadcast %28 : vector<2x24x1xf32> to vector<2x24x64xf32>
    %30 = arith.subf %24, %29 : vector<2x24x64xf32>
    %31 = arith.mulf %30, %30 : vector<2x24x64xf32>
    %cst_15 = arith.constant dense<0.000000e+00> : vector<2x24xf32>
    %32 = vector.multi_reduction <add>, %31, %cst_15 [2] : vector<2x24x64xf32> to vector<2x24xf32>
    %33 = vector.shape_cast %32 : vector<2x24xf32> to vector<2x24x1xf32>
    %cst_16 = arith.constant 6.400000e+01 : f32
    %34 = vector.broadcast %cst_16 : f32 to vector<2x24x1xf32>
    %35 = arith.divf %33, %34 : vector<2x24x1xf32>
    %cst_17 = arith.constant 9.99999974E-6 : f32
    %36 = vector.broadcast %cst_17 : f32 to vector<2x24x1xf32>
    %37 = arith.addf %35, %36 : vector<2x24x1xf32>
    %38 = math.rsqrt %37 : vector<2x24x1xf32>
    %39 = vector.broadcast %38 : vector<2x24x1xf32> to vector<2x24x64xf32>
    %40 = arith.mulf %30, %39 : vector<2x24x64xf32>
    %41 = vector.shape_cast %0 : vector<1x64xf32> to vector<1x1x64xf32>
    %42 = vector.broadcast %41 : vector<1x1x64xf32> to vector<2x24x64xf32>
    %43 = arith.mulf %40, %42 : vector<2x24x64xf32>
    %44 = vector.shape_cast %1 : vector<1x64xf32> to vector<1x1x64xf32>
    %45 = vector.broadcast %44 : vector<1x1x64xf32> to vector<2x24x64xf32>
    %46 = arith.addf %43, %45 : vector<2x24x64xf32>
    %cst_18 = arith.constant dense<0.000000e+00> : vector<2x24xf32>
    %47 = vector.multi_reduction <add>, %46, %cst_18 [2] : vector<2x24x64xf32> to vector<2x24xf32>
    %48 = vector.shape_cast %47 : vector<2x24xf32> to vector<2x24x1xf32>
    %cst_19 = arith.constant dense<0.000000e+00> : vector<2x1xf32>
    %49 = vector.multi_reduction <add>, %48, %cst_19 [1] : vector<2x24x1xf32> to vector<2x1xf32>
    %50 = vector.shape_cast %49 : vector<2x1xf32> to vector<2x1x1xf32>
    %cst_20 = arith.constant 6.51041686E-4 : f32
    %51 = vector.broadcast %cst_20 : f32 to vector<2x1x1xf32>
    %52 = arith.mulf %50, %51 : vector<2x1x1xf32>
    %53 = vector.broadcast %52 : vector<2x1x1xf32> to vector<2x24x64xf32>
    %54 = arith.subf %46, %53 : vector<2x24x64xf32>
    %55 = arith.mulf %54, %54 : vector<2x24x64xf32>
    %cst_21 = arith.constant dense<0.000000e+00> : vector<2x24xf32>
    %56 = vector.multi_reduction <add>, %55, %cst_21 [2] : vector<2x24x64xf32> to vector<2x24xf32>
    %57 = vector.shape_cast %56 : vector<2x24xf32> to vector<2x24x1xf32>
    %cst_22 = arith.constant dense<0.000000e+00> : vector<2x1xf32>
    %58 = vector.multi_reduction <add>, %57, %cst_22 [1] : vector<2x24x1xf32> to vector<2x1xf32>
    %59 = vector.shape_cast %58 : vector<2x1xf32> to vector<2x1x1xf32>
    %cst_23 = arith.constant 6.51041686E-4 : f32
    %60 = vector.broadcast %cst_23 : f32 to vector<2x1x1xf32>
    %61 = arith.mulf %59, %60 : vector<2x1x1xf32>
    %cst_24 = arith.constant 0.00999999977 : f32
    %62 = vector.broadcast %cst_24 : f32 to vector<2x1x1xf32>
    %63 = arith.addf %61, %62 : vector<2x1x1xf32>
    %64 = math.rsqrt %63 : vector<2x1x1xf32>
    %65 = vector.broadcast %64 : vector<2x1x1xf32> to vector<2x24x64xf32>
    %66 = arith.mulf %54, %65 : vector<2x24x64xf32>
    %67 = tpu.concatenate %46, %66 in 2 : vector<2x24x64xf32>, vector<2x24x64xf32> -> vector<2x24x128xf32>
    %c0_25 = arith.constant 0 : index
    %c0_26 = arith.constant 0 : index
    %c0_27 = arith.constant 0 : index
    %68 = vector.load %arg4[%c0_25, %c0_26, %c0_27] : memref<2x24x128xf32, #tpu.memory_space<vmem>>, vector<2x24x128xf32>
    tpu.vector_store %arg4[%c0_25, %c0_26, %c0_27], %67 {strides = array<i32>} : memref<2x24x128xf32, #tpu.memory_space<vmem>>, vector<2x24x128xf32>,
    return
  }
}

</mosaic_0001>

<llo_original>
// kernel: tpu_custom_call.1
$region0: #{tpu_custom_call.1}
  #allocation0 [shape = 'u32[]', space=smem, size = 0x4, offset = 0x4, fixed_abs, tag = 'smem constant byte address 0x4 - core index']
  #allocation1 [shape = 'u32[144,128]{1,0:T(1,128)}', space=vmem, size = 0x12000, scoped, tag = 'internal scratch']
  %s0 = inlined_call_operand.hbm [shape: f32[16,64], index: 0, kind: input, shape index: {}]
  %s1 = inlined_call_operand.hbm [shape: f32[2,24,64], index: 1, kind: input, shape index: {}]
  %s2 = inlined_call_operand.vmem [shape: f32[2,64], index: 2, kind: input, shape index: {}]
  %s3 = inlined_call_operand.hbm [shape: f32[16,64], index: 3, kind: output, shape index: {0}]
  %s4 = inlined_call_operand.hbm [shape: f32[2,24,128], index: 4, kind: output, shape index: {1}]
  %5 = xla_tuple %s3, %s4
  %s6 = sld [smem:[#allocation0]]
  $region38: #{tpu_custom_call.1} parent=0
    _
  %s8 = ssub.s32 1, %s6
  %s9 = scalar_select 0, %s8, %s6
  $region1: #{tpu_custom_call.1} parent=0
    #allocation2 [shape = 'u8[8192]{0}', space=vmem, size = 0x2000, scoped, tag = 'input window, operand 0, single buffered']
    #allocation3 [shape = 's32[1]{0}', space=sflag, size = 0x4, scoped, tag = 'scoped memory for tpu_custom_call.1']
    #allocation4 [shape = 's32[1]{0}', space=sflag, size = 0x4, scoped, tag = 'scoped memory for tpu_custom_call.1']
    #allocation5 [shape = 'u8[24576]{0}', space=vmem, size = 0x6000, scoped, tag = 'input window, operand 1, single buffered']
    #allocation6 [shape = 's32[1]{0}', space=sflag, size = 0x4, scoped, tag = 'scoped memory for tpu_custom_call.1']
    #allocation7 [shape = 'u8[8192]{0}', space=vmem, size = 0x2000, scoped, tag = 'output window, operand 0, single buffered']
    #allocation8 [shape = 'u8[24576]{0}', space=vmem, size = 0x6000, scoped, tag = 'output window, operand 1, single buffered']
    #allocation9 [shape = 's32[1]{0}', space=sflag, size = 0x4, scoped, tag = 'scoped memory for tpu_custom_call.1']
    %10 = vsyncpa [#allocation3], 0
    %11 = vsyncpa [#allocation6], 0
    %12 = vsyncpa [#allocation4], 0
    %13 = vsyncpa [#allocation9], 0
    // Predicated region
    $region2: #{tpu_custom_call.1} parent=1 // pred_check
      _
    $region3: #{tpu_custom_call.1} parent=1 // pred_check_branch
      %15 = sbr.rel (0) target = $region5
    $region4: #{tpu_custom_call.1} parent=1 // pred_region
      %s17 = ssub.s32 256, 256
      %18 = vsyncadd [#allocation3], %s17
      %s19 = sshll.u32 [#allocation2], 4
      %s20 = int_to_ptr.vmem [resolvable:$true] %s19
      %25 = dma.hbm_to_vmem [thread:$0]  %s0, 256, %s20, [#allocation3], 128, 128, 8
    $region5: #{tpu_custom_call.1} parent=1 // pred_fallthru
      _
    // Predicated region
    $region6: #{tpu_custom_call.1} parent=1 // pred_check
      _
    $region7: #{tpu_custom_call.1} parent=1 // pred_check_branch
      %27 = sbr.rel (0) target = $region9
    $region8: #{tpu_custom_call.1} parent=1 // pred_region
      %s29 = ssub.s32 768, 768
      %30 = vsyncadd [#allocation6], %s29
      %s31 = sshll.u32 [#allocation5], 4
      %s32 = int_to_ptr.vmem [resolvable:$true] %s31
      %37 = dma.hbm_to_vmem [thread:$0]  %s1, 768, %s32, [#allocation6], 128, 128, 8
    $region9: #{tpu_custom_call.1} parent=1 // pred_fallthru
      _
    // Predicated region
    $region10: #{tpu_custom_call.1} parent=1 // pred_check
      _
    $region11: #{tpu_custom_call.1} parent=1 // pred_check_branch
      %39 = sbr.rel (0) target = $region13
    $region12: #{tpu_custom_call.1} parent=1 // pred_region
      _
    $region13: #{tpu_custom_call.1} parent=1 // pred_fallthru
      _
    // Predicated region
    $region14: #{tpu_custom_call.1} parent=1 // pred_check
      _
    $region15: #{tpu_custom_call.1} parent=1 // pred_check_branch
      %41 = sbr.rel (0) target = $region17
    $region16: #{tpu_custom_call.1} parent=1 // pred_region
      %42 = dma.done [#allocation3], 256
    $region17: #{tpu_custom_call.1} parent=1 // pred_fallthru
      _
    // Predicated region
    $region18: #{tpu_custom_call.1} parent=1 // pred_check
      _
    $region19: #{tpu_custom_call.1} parent=1 // pred_check_branch
      %44 = sbr.rel (0) target = $region21
    $region20: #{tpu_custom_call.1} parent=1 // pred_region
      %45 = dma.done [#allocation6], 768
    $region21: #{tpu_custom_call.1} parent=1 // pred_fallthru
      _
    %v46 = vld [vmem:[%s2] sm:$0x1]
    %v47 = vld [vmem:[%s2 + $0x1] sm:$0x1]
    %v48 = vld [vmem:[#allocation2] sm:$0xff]
    %v49 = vld [vmem:[#allocation2 + $0x8] sm:$0xff]
    %vm50 = vcmask 523264
    %v51 = vsel %vm50, %v48, 0.0
    %52 = vadd.xlane.f32.xlu0 %v51
    %v53 = vpop.xlane.xlu0 %52
    %v54 = vsel %vm50, %v49, 0.0
    %55 = vadd.xlane.f32.xlu0 %v54
    %v56 = vpop.xlane.xlu0 %55
    %v57 = vrcp.pop 64.0
    %v58 = vmul.f32 %v53, %v57
    %v59 = vmul.f32 %v56, %v57
    %v60 = vsub.f32 %v48, %v58
    %v61 = vsub.f32 %v49, %v59
    %v62 = vmul.f32 %v60, %v60
    %v63 = vmul.f32 %v61, %v61
    %v64 = vsel %vm50, %v62, 0.0
    %65 = vadd.xlane.f32.xlu0 %v64
    %v66 = vpop.xlane.xlu0 %65
    %v67 = vsel %vm50, %v63, 0.0
    %68 = vadd.xlane.f32.xlu0 %v67
    %v69 = vpop.xlane.xlu0 %68
    %v70 = vmul.f32 %v66, %v57
    %v71 = vmul.f32 %v69, %v57
    %v72 = vadd.f32 %v70, 1e-05
    %v73 = vadd.f32 %v71, 1e-05
    %v74 = vrsqrt.pop %v72
    %v75 = vrsqrt.pop %v73
    %v76 = vmul.f32 %v60, %v74
    %v77 = vmul.f32 %v61, %v75
    %v78 = vlaneseq
    %v79 = vshrl.u32 %v78, 7
    %v80 = vsub.s32 0, %v79
    %v81 = vrot.slane %v46, %v80
    %v82 = vmul.f32 %v76, %v81
    %v83 = vmul.f32 %v77, %v81
    %v84 = vlaneseq
    %v85 = vshrl.u32 %v84, 7
    %v86 = vsub.s32 0, %v85
    %v87 = vrot.slane %v47, %v86
    %v88 = vadd.f32 %v82, %v87
    %v89 = vadd.f32 %v83, %v87
    %90 = vst.msk [vmem:[#allocation7] sm:$0xff] %vm50, %v88
    %91 = vst.msk [vmem:[#allocation7 + $0x8] sm:$0xff] %vm50, %v89
    %v92 = vld [vmem:[#allocation5] sm:$0xff]
    %v93 = vld [vmem:[#allocation5 + $0x8] sm:$0xff]
    %v94 = vld [vmem:[#allocation5 + $0x10] sm:$0xff]
    %v95 = vld [vmem:[#allocation5 + $0x18] sm:$0xff]
    %v96 = vld [vmem:[#allocation5 + $0x20] sm:$0xff]
    %v97 = vld [vmem:[#allocation5 + $0x28] sm:$0xff]
    %v98 = vsel %vm50, %v92, 0.0
    %99 = vadd.xlane.f32.xlu0 %v98
    %v100 = vpop.xlane.xlu0 %99
    %v101 = vsel %vm50, %v93, 0.0
    %102 = vadd.xlane.f32.xlu0 %v101
    %v103 = vpop.xlane.xlu0 %102
    %v104 = vsel %vm50, %v94, 0.0
    %105 = vadd.xlane.f32.xlu0 %v104
    %v106 = vpop.xlane.xlu0 %105
    %v107 = vsel %vm50, %v95, 0.0
    %108 = vadd.xlane.f32.xlu0 %v107
    %v109 = vpop.xlane.xlu0 %108
    %v110 = vsel %vm50, %v96, 0.0
    %111 = vadd.xlane.f32.xlu0 %v110
    %v112 = vpop.xlane.xlu0 %111
    %v113 = vsel %vm50, %v97, 0.0
    %114 = vadd.xlane.f32.xlu0 %v113
    %v115 = vpop.xlane.xlu0 %114
    %v116 = vmul.f32 %v100, %v57
    %v117 = vmul.f32 %v103, %v57
    %v118 = vmul.f32 %v106, %v57
    %v119 = vmul.f32 %v109, %v57
    %v120 = vmul.f32 %v112, %v57
    %v121 = vmul.f32 %v115, %v57
    %v122 = vsub.f32 %v92, %v116
    %v123 = vsub.f32 %v93, %v117
    %v124 = vsub.f32 %v94, %v118
    %v125 = vsub.f32 %v95, %v119
    %v126 = vsub.f32 %v96, %v120
    %v127 = vsub.f32 %v97, %v121
    %v128 = vmul.f32 %v122, %v122
    %v129 = vmul.f32 %v123, %v123
    %v130 = vmul.f32 %v124, %v124
    %v131 = vmul.f32 %v125, %v125
    %v132 = vmul.f32 %v126, %v126
    %v133 = vmul.f32 %v127, %v127
    %v134 = vsel %vm50, %v128, 0.0
    %135 = vadd.xlane.f32.xlu0 %v134
    %v136 = vpop.xlane.xlu0 %135
    %v137 = vsel %vm50, %v129, 0.0
    %138 = vadd.xlane.f32.xlu0 %v137
    %v139 = vpop.xlane.xlu0 %138
    %v140 = vsel %vm50, %v130, 0.0
    %141 = vadd.xlane.f32.xlu0 %v140
    %v142 = vpop.xlane.xlu0 %141
    %v143 = vsel %vm50, %v131, 0.0
    %144 = vadd.xlane.f32.xlu0 %v143
    %v145 = vpop.xlane.xlu0 %144
    %v146 = vsel %vm50, %v132, 0.0
    %147 = vadd.xlane.f32.xlu0 %v146
    %v148 = vpop.xlane.xlu0 %147
    %v149 = vsel %vm50, %v133, 0.0
    %150 = vadd.xlane.f32.xlu0 %v149
    %v151 = vpop.xlane.xlu0 %150
    %v152 = vmul.f32 %v136, %v57
    %v153 = vmul.f32 %v139, %v57
    %v154 = vmul.f32 %v142, %v57
    %v155 = vmul.f32 %v145, %v57
    %v156 = vmul.f32 %v148, %v57
    %v157 = vmul.f32 %v151, %v57
    %v158 = vadd.f32 %v152, 1e-05
    %v159 = vadd.f32 %v153, 1e-05
    %v160 = vadd.f32 %v154, 1e-05
    %v161 = vadd.f32 %v155, 1e-05
    %v162 = vadd.f32 %v156, 1e-05
    %v163 = vadd.f32 %v157, 1e-05
    %v164 = vrsqrt.pop %v158
    %v165 = vrsqrt.pop %v159
    %v166 = vrsqrt.pop %v160
    %v167 = vrsqrt.pop %v161
    %v168 = vrsqrt.pop %v162
    %v169 = vrsqrt.pop %v163
    %v170 = vmul.f32 %v122, %v164
    %v171 = vmul.f32 %v123, %v165
    %v172 = vmul.f32 %v124, %v166
    %v173 = vmul.f32 %v125, %v167
    %v174 = vmul.f32 %v126, %v168
    %v175 = vmul.f32 %v127, %v169
    %v176 = vmul.f32 %v170, %v81
    %v177 = vmul.f32 %v171, %v81
    %v178 = vmul.f32 %v172, %v81
    %v179 = vmul.f32 %v173, %v81
    %v180 = vmul.f32 %v174, %v81
    %v181 = vmul.f32 %v175, %v81
    %v182 = vadd.f32 %v176, %v87
    %v183 = vadd.f32 %v177, %v87
    %v184 = vadd.f32 %v178, %v87
    %v185 = vadd.f32 %v179, %v87
    %v186 = vadd.f32 %v180, %v87
    %v187 = vadd.f32 %v181, %v87
    %v188 = vsel %vm50, %v182, 0.0
    %189 = vadd.xlane.f32.xlu0 %v188
    %v190 = vpop.xlane.xlu0 %189
    %v191 = vsel %vm50, %v183, 0.0
    %192 = vadd.xlane.f32.xlu0 %v191
    %v193 = vpop.xlane.xlu0 %192
    %v194 = vsel %vm50, %v184, 0.0
    %195 = vadd.xlane.f32.xlu0 %v194
    %v196 = vpop.xlane.xlu0 %195
    %v197 = vsel %vm50, %v185, 0.0
    %198 = vadd.xlane.f32.xlu0 %v197
    %v199 = vpop.xlane.xlu0 %198
    %v200 = vsel %vm50, %v186, 0.0
    %201 = vadd.xlane.f32.xlu0 %v200
    %v202 = vpop.xlane.xlu0 %201
    %v203 = vsel %vm50, %v187, 0.0
    %204 = vadd.xlane.f32.xlu0 %v203
    %v205 = vpop.xlane.xlu0 %204
    %v206 = vadd.f32 %v190, %v193
    %v207 = vadd.f32 %v206, %v196
    %v208 = vrot.slane %v207, 4
    %v209 = vadd.f32 %v207, %v208
    %v210 = vrot.slane %v209, 2
    %v211 = vadd.f32 %v209, %v210
    %v212 = vrot.slane %v211, 1
    %v213 = vadd.f32 %v211, %v212
    %v214 = vadd.f32 %v199, %v202
    %v215 = vadd.f32 %v214, %v205
    %v216 = vrot.slane %v215, 4
    %v217 = vadd.f32 %v215, %v216
    %v218 = vrot.slane %v217, 2
    %v219 = vadd.f32 %v217, %v218
    %v220 = vrot.slane %v219, 1
    %v221 = vadd.f32 %v219, %v220
    %v222 = vmul.f32 %v213, 0.0006510417
    %v223 = vmul.f32 %v221, 0.0006510417
    %v224 = vsub.f32 %v182, %v222
    %v225 = vsub.f32 %v183, %v222
    %v226 = vsub.f32 %v184, %v222
    %v227 = vsub.f32 %v185, %v223
    %v228 = vsub.f32 %v186, %v223
    %v229 = vsub.f32 %v187, %v223
    %v230 = vmul.f32 %v224, %v224
    %v231 = vmul.f32 %v225, %v225
    %v232 = vmul.f32 %v226, %v226
    %v233 = vmul.f32 %v227, %v227
    %v234 = vmul.f32 %v228, %v228
    %v235 = vmul.f32 %v229, %v229
    %v236 = vsel %vm50, %v230, 0.0
    %237 = vadd.xlane.f32.xlu0 %v236
    %v238 = vpop.xlane.xlu0 %237
    %v239 = vsel %vm50, %v231, 0.0
    %240 = vadd.xlane.f32.xlu0 %v239
    %v241 = vpop.xlane.xlu0 %240
    %v242 = vsel %vm50, %v232, 0.0
    %243 = vadd.xlane.f32.xlu0 %v242
    %v244 = vpop.xlane.xlu0 %243
    %v245 = vsel %vm50, %v233, 0.0
    %246 = vadd.xlane.f32.xlu0 %v245
    %v247 = vpop.xlane.xlu0 %246
    %v248 = vsel %vm50, %v234, 0.0
    %249 = vadd.xlane.f32.xlu0 %v248
    %v250 = vpop.xlane.xlu0 %249
    %v251 = vsel %vm50, %v235, 0.0
    %252 = vadd.xlane.f32.xlu0 %v251
    %v253 = vpop.xlane.xlu0 %252
    %v254 = vadd.f32 %v238, %v241
    %v255 = vadd.f32 %v254, %v244
    %v256 = vrot.slane %v255, 4
    %v257 = vadd.f32 %v255, %v256
    %v258 = vrot.slane %v257, 2
    %v259 = vadd.f32 %v257, %v258
    %v260 = vrot.slane %v259, 1
    %v261 = vadd.f32 %v259, %v260
    %v262 = vadd.f32 %v247, %v250
    %v263 = vadd.f32 %v262, %v253
    %v264 = vrot.slane %v263, 4
    %v265 = vadd.f32 %v263, %v264
    %v266 = vrot.slane %v265, 2
    %v267 = vadd.f32 %v265, %v266
    %v268 = vrot.slane %v267, 1
    %v269 = vadd.f32 %v267, %v268
    %v270 = vmul.f32 %v261, 0.0006510417
    %v271 = vmul.f32 %v269, 0.0006510417
    %v272 = vadd.f32 %v270, 0.01
    %v273 = vadd.f32 %v271, 0.01
    %v274 = vrsqrt.pop %v272
    %v275 = vrsqrt.pop %v273
    %v276 = vmul.f32 %v224, %v274
    %v277 = vmul.f32 %v225, %v274
    %v278 = vmul.f32 %v226, %v274
    %v279 = vmul.f32 %v227, %v275
    %v280 = vmul.f32 %v228, %v275
    %v281 = vmul.f32 %v229, %v275
    %288 = vrot.lane.b32.xlu0 %v276, 64
    %v289 = vpop.permute.xlu0 %288
    %290 = vrot.lane.b32.xlu0 %v277, 64
    %v291 = vpop.permute.xlu0 %290
    %292 = vrot.lane.b32.xlu0 %v278, 64
    %v293 = vpop.permute.xlu0 %292
    %294 = vrot.lane.b32.xlu0 %v279, 64
    %v295 = vpop.permute.xlu0 %294
    %296 = vrot.lane.b32.xlu0 %v280, 64
    %v297 = vpop.permute.xlu0 %296
    %298 = vrot.lane.b32.xlu0 %v281, 64
    %v299 = vpop.permute.xlu0 %298
    %v306 = vsel %vm50, %v182, %v289
    %v307 = vsel %vm50, %v183, %v291
    %v308 = vsel %vm50, %v184, %v293
    %v309 = vsel %vm50, %v185, %v295
    %v310 = vsel %vm50, %v186, %v297
    %v311 = vsel %vm50, %v187, %v299
    %312 = vst [vmem:[#allocation8] sm:$0xff] %v306
    %313 = vst [vmem:[#allocation8 + $0x8] sm:$0xff] %v307
    %314 = vst [vmem:[#allocation8 + $0x10] sm:$0xff] %v308
    %315 = vst [vmem:[#allocation8 + $0x18] sm:$0xff] %v309
    %316 = vst [vmem:[#allocation8 + $0x20] sm:$0xff] %v310
    %317 = vst [vmem:[#allocation8 + $0x28] sm:$0xff] %v311
    // Predicated region
    $region22: #{tpu_custom_call.1} parent=1 // pred_check
      _
    $region23: #{tpu_custom_call.1} parent=1 // pred_check_branch
      %319 = sbr.rel (0) target = $region25
    $region24: #{tpu_custom_call.1} parent=1 // pred_region
      %s321 = ssub.s32 256, 256
      %322 = vsyncadd [#allocation4], %s321
      %s323 = sshll.u32 [#allocation7], 4
      %s324 = int_to_ptr.vmem [resolvable:$true] %s323
      %329 = dma.vmem_to_hbm [thread:$0]  %s324, 256, %s3, [#allocation4], 128, 128, 8
    $region25: #{tpu_custom_call.1} parent=1 // pred_fallthru
      _
    // Predicated region
    $region26: #{tpu_custom_call.1} parent=1 // pred_check
      _
    $region27: #{tpu_custom_call.1} parent=1 // pred_check_branch
      %331 = sbr.rel (0) target = $region29
    $region28: #{tpu_custom_call.1} parent=1 // pred_region
      %s333 = ssub.s32 768, 768
      %334 = vsyncadd [#allocation9], %s333
      %s335 = sshll.u32 [#allocation8], 4
      %s336 = int_to_ptr.vmem [resolvable:$true] %s335
      %341 = dma.vmem_to_hbm [thread:$0]  %s336, 768, %s4, [#allocation9], 128, 128, 8
    $region29: #{tpu_custom_call.1} parent=1 // pred_fallthru
      _
    // Predicated region
    $region30: #{tpu_custom_call.1} parent=1 // pred_check
      _
    $region31: #{tpu_custom_call.1} parent=1 // pred_check_branch
      %343 = sbr.rel (0) target = $region33
    $region32: #{tpu_custom_call.1} parent=1 // pred_region
      %344 = dma.done [#allocation4], 256
    $region33: #{tpu_custom_call.1} parent=1 // pred_fallthru
      _
    // Predicated region
    $region34: #{tpu_custom_call.1} parent=1 // pred_check
      _
    $region35: #{tpu_custom_call.1} parent=1 // pred_check_branch
      %346 = sbr.rel (0) target = $region37
    $region36: #{tpu_custom_call.1} parent=1 // pred_region
      %347 = dma.done [#allocation9], 768
    $region37: #{tpu_custom_call.1} parent=1 // pred_fallthru
      _
    %348 = vsyncpa [#allocation3], 1
    %349 = vsyncpa [#allocation6], 1
    %350 = vsyncpa [#allocation4], 1
    %351 = vsyncpa [#allocation9], 1

</llo_original>
